<compile_context>
chip_gen: v6e
topology: v6e:2x2x1
jax: 0.10.0
libtpu: 0.0.40
codegen_flags: <defaults>
</compile_context>

<pallas_src>
import functools

import jax
import jax.numpy as jnp
from jax import lax
from jax.experimental import pallas as pl
from jax.experimental.pallas import tpu as pltpu


def _spectral_distance_kernel(v_ref, phi_ref, cid_row_ref, cid_col_ref, out_ref,
                              *, inf_distance: float):
    """One grid step = G graphs: masked spectral distance matrices [G, N, N]."""
    v = v_ref[...]                                   # (G, N, N) f32 eigvec matrices
    phi = phi_ref[...]                               # (G, 1, N) f32 phi(lambda_k)

    vl = v * phi                                     # scale column k by phi_k
    # exp_laplacian = V diag(phi) V^T : batched MXU matmul contracting the
    # lane (last) dim of both operands -> no transpose materialized in VMEM.
    exp_lap = lax.dot_general(vl, v, (((2,), (2,)), ((0,), (0,))),
                              preferred_element_type=jnp.float32)   # (G, N, N)

    # diag_i in sublane layout: cheap lane reduction (no iota / masked reduce).
    diag_col = jnp.sum(vl * v, axis=2, keepdims=True)               # (G, N, 1)
    # diag_j in lane layout: tiny (1,N)x(N,N) mat-vec on the MXU -- avoids a
    # cross-lane transpose or a masked sublane reduction of exp_lap.
    vsq = v * v
    diag_row = lax.dot_general(phi, vsq, (((2,), (2,)), ((0,), (0,))),
                               preferred_element_type=jnp.float32)  # (G, 1, N)

    # Squared distance, clamped so f32 rounding can never feed sqrt a negative.
    dist = jnp.sqrt(jnp.maximum(diag_col + diag_row - 2.0 * exp_lap, 0.0))

    # The exact distance diagonal is 0 (PyTorch computes it in fp64); force it
    # so f32 rounding noise of O(1e-3) cannot appear there.
    ri = lax.broadcasted_iota(jnp.int32, dist.shape, 1)
    ci = lax.broadcasted_iota(jnp.int32, dist.shape, 2)
    dist = jnp.where(ri == ci, 0.0, dist)

    # Component mask rebuilt from per-node component ids (cid < 0 == padding /
    # node not in any component).  jnp.where == single vsel per element.
    cid_r = cid_row_ref[...]                         # (G, 1, N) int32
    cid_c = cid_col_ref[...]                         # (G, N, 1) int32
    same = (cid_c == cid_r) & (cid_c >= 0)           # (G, N, N) bool
    out_ref[...] = jnp.where(same, dist, inf_distance)


def _graphs_per_step(num_graphs: int, max_nodes: int,
                     target_block_bytes: int = 2 * 1024 * 1024) -> int:
    """Pick G so each [G, N, N] f32 block is ~target_block_bytes (amortizes
    the ~0.35us/step pipeline overhead for small graphs)."""
    per_graph = max(1, max_nodes * max_nodes * 4)
    return int(max(1, min(num_graphs, target_block_bytes // per_graph)))


def learnable_spectral_distance_forward(complete_graph_index, batch, eigvecs,
                                        eigvals, component_index, mlp_params,
                                        num_graphs: int, max_nodes: int,
                                        inf_distance: float = 512.0,
                                        rpe=None):
    """Pallas implementation of LearnableSpectralDistanceLayer.forward.

    Returns (new_rpe, dense_distance[:B]).
    """
    B, N = int(num_graphs), int(max_nodes)
    E = complete_graph_index.shape[1]            # = sum_b n_b^2 (complete graph)
    num_nodes = batch.shape[0]
    w1, b1, w2, b2 = mlp_params

    counts = jnp.bincount(batch, length=B).astype(jnp.int32)
    offsets = jnp.concatenate([jnp.zeros((1,), jnp.int32),
                               jnp.cumsum(counts)[:-1].astype(jnp.int32)])

    # ---- graphs per grid step ---------------------------------------------
    G = _graphs_per_step(B, N)
    num_blocks = (B + G - 1) // G
    B_pad = num_blocks * G

    def to_local(edge_index):
        s, d = edge_index[0], edge_index[1]
        gb = batch[s].astype(jnp.int32)
        return (gb, (s - offsets[gb]).astype(jnp.int32),
                (d - offsets[gb]).astype(jnp.int32))

    eb, er, ec = to_local(complete_graph_index)

    # to_dense_adj scatter of eigvecs (wrapper glue, one pass).
    v_dense = jnp.zeros((B_pad, N, N), jnp.float32).at[eb, er, ec].add(
        eigvecs.astype(jnp.float32))

    # to_dense_batch of eigvals; phi = MLP(lambda) precomputed here (it is only
    # 4N bytes/graph -- not worth pipelining a 4-input MLP inside the kernel).
    node_local = (jnp.arange(num_nodes, dtype=jnp.int32)
                  - offsets[batch]).astype(jnp.int32)
    lam_dense = jnp.zeros((B_pad, N), jnp.float32).at[batch, node_local].set(
        eigvals.astype(jnp.float32))
    x = lam_dense[..., None]                                           # (B_pad, N, 1)
    h = jax.nn.gelu(x * w1[:, 0][None, None, :] + b1[None, None, :],
                    approximate=False)            # exact-erf GELU == torch F.gelu
    phi = jnp.sum(h * w2[0][None, None, :], axis=-1) + b2[0]           # (B_pad, N)
    phi_dense = phi[:, None, :].astype(jnp.float32)                    # (B_pad, 1, N)

    # Per-node component id = min global node id in the node's component
    # (component_index lists all intra-component pairs incl. self pairs).
    # -1 marks padding slots / nodes not present in component_index.
    big = jnp.iinfo(jnp.int32).max
    cid_nodes = jnp.full((num_nodes,), big, jnp.int32).at[
        component_index[0]].min(component_index[1].astype(jnp.int32))
    cid_nodes = jnp.where(cid_nodes == big, -1, cid_nodes)
    cid_row = jnp.full((B_pad, 1, N), -1, jnp.int32).at[
        batch, 0, node_local].set(cid_nodes)
    cid_col = jnp.swapaxes(cid_row, 1, 2)                              # (B_pad, N, 1)

    kernel = functools.partial(_spectral_distance_kernel,
                               inf_distance=float(inf_distance))

    block_bytes = G * N * N * 4
    vmem_limit = int(min(64 * 1024 * 1024,
                         max(16 * 1024 * 1024, 12 * block_bytes)))

    dist_dense = pl.pallas_call(
        kernel,
        out_shape=jax.ShapeDtypeStruct((B_pad, N, N), jnp.float32),
        grid_spec=pltpu.PrefetchScalarGridSpec(
            num_scalar_prefetch=0,
            grid=(num_blocks,),
            in_specs=[
                pl.BlockSpec((G, N, N), lambda b: (b, 0, 0)),   # eigvec matrices
                pl.BlockSpec((G, 1, N), lambda b: (b, 0, 0)),   # phi(lambda)
                pl.BlockSpec((G, 1, N), lambda b: (b, 0, 0)),   # component id (row)
                pl.BlockSpec((G, N, 1), lambda b: (b, 0, 0)),   # component id (col)
            ],
            out_specs=pl.BlockSpec((G, N, N), lambda b: (b, 0, 0)),
        ),
        compiler_params=pltpu.CompilerParams(
            dimension_semantics=("parallel",),                  # graph blocks independent
            vmem_limit_bytes=vmem_limit),
    )(v_dense, phi_dense, cid_row, cid_col)

    # from_dense_adj: row-major real (i, j) pairs per graph, computed
    # arithmetically from counts (no jnp.nonzero sort/scan).
    sq_counts = (counts * counts).astype(jnp.int32)
    edge_off = jnp.concatenate([jnp.zeros((1,), jnp.int32),
                                jnp.cumsum(sq_counts).astype(jnp.int32)])
    e_idx = jnp.arange(E, dtype=jnp.int32)
    gb = (jnp.searchsorted(edge_off, e_idx, side='right') - 1).astype(jnp.int32)
    rel = e_idx - edge_off[gb]
    nb = jnp.maximum(counts[gb], 1)
    dist_flat = dist_dense[gb, rel // nb, rel % nb]

    new_rpe = dist_flat if rpe is None else jnp.column_stack([rpe, dist_flat])
    return new_rpe, dist_dense[:B]


def _reference(complete_graph_index, batch, eigvecs, eigvals, component_index,
               mlp_params, num_graphs, max_nodes, inf_distance=512.0, rpe=None):
    """Plain-JAX mirror of the PyTorch forward (float32)."""
    B, N = num_graphs, max_nodes
    E = complete_graph_index.shape[1]
    w1, b1, w2, b2 = mlp_params
    counts = jnp.bincount(batch, length=B)
    offsets = jnp.concatenate([jnp.zeros((1,), jnp.int32),
                               jnp.cumsum(counts)[:-1].astype(jnp.int32)])

    def to_local(ei):
        s, d = ei[0], ei[1]
        gb = batch[s]
        return gb, s - offsets[gb], d - offsets[gb]

    eb, er, ec = to_local(complete_graph_index)
    cb, cr, cc = to_local(component_index)
    v = jnp.zeros((B, N, N), jnp.float32).at[eb, er, ec].add(eigvecs.astype(jnp.float32))
    comp = jnp.zeros((B, N, N), jnp.float32).at[cb, cr, cc].add(1.0)
    node_local = jnp.arange(batch.shape[0]) - offsets[batch]
    lam = jnp.zeros((B, N), jnp.float32).at[batch, node_local].set(
        eigvals.astype(jnp.float32))

    x = lam[..., None]                                                 # (B, N, 1)
    h = jax.nn.gelu(x * w1[:, 0][None, None, :] + b1[None, None, :],
                    approximate=False)                                 # (B, N, H)
    phi = jnp.sum(h * w2[0][None, None, :], axis=-1) + b2[0]           # (B, N)

    exp_lap = jnp.matmul(v * phi[:, None, :], jnp.swapaxes(v, 1, 2),
                         precision=lax.Precision.HIGHEST)              # (B, N, N)
    diag = jnp.diagonal(exp_lap, axis1=1, axis2=2)                     # (B, N)
    dist = jnp.sqrt(diag[:, None, :] + diag[:, :, None] - 2.0 * exp_lap)
    neg = (comp == 0.0).astype(jnp.float32)
    dist = comp * dist + inf_distance * neg

    ar = jnp.arange(N)
    node_mask = ar[None, :] < counts[:, None]
    pair_mask = node_mask[:, :, None] & node_mask[:, None, :]
    flat_idx = jnp.nonzero(pair_mask.reshape(-1), size=E)[0]
    dist_flat = dist.reshape(-1)[flat_idx]
    new_rpe = dist_flat if rpe is None else jnp.column_stack([rpe, dist_flat])
    return new_rpe, dist


if __name__ == "__main__":
    key = jax.random.PRNGKey(0)
    k1, k2, k3, k4, k5, k6 = jax.random.split(key, 6)

    nodes_per_graph = [12, 9]          # N = 12, exercises padding of graph 1
    B = len(nodes_per_graph)
    N = max(nodes_per_graph)
    H = 16
    num_nodes = sum(nodes_per_graph)

    # batch vector + complete-graph edge index (all (i, j) pairs incl. self).
    batch_list, srcs, dsts = [], [], []
    offset = 0
    for g, n in enumerate(nodes_per_graph):
        batch_list += [g] * n
        for i in range(n):
            for j in range(n):
                srcs.append(offset + i)
                dsts.append(offset + j)
        offset += n
    batch = jnp.asarray(batch_list, dtype=jnp.int32)
    complete_graph_index = jnp.asarray([srcs, dsts], dtype=jnp.int32)
    E = complete_graph_index.shape[1]

    # component_index: graph 0 is one component; graph 1 splits {0..4} / {5..8}.
    components = [[list(range(12))], [list(range(5)), list(range(5, 9))]]
    csrc, cdst = [], []
    offset = 0
    for g, n in enumerate(nodes_per_graph):
        for comp_nodes in components[g]:
            for i in comp_nodes:
                for j in comp_nodes:
                    csrc.append(offset + i)
                    cdst.append(offset + j)
        offset += n
    component_index = jnp.asarray([csrc, cdst], dtype=jnp.int32)

    eigvecs = jax.random.normal(k1, (E,), dtype=jnp.float32)
    eigvals = jax.random.uniform(k2, (num_nodes,), dtype=jnp.float32,
                                 minval=0.0, maxval=2.0)

    # NonLinear(1, 1, hidden_dim=H) parameters (torch Linear layouts).
    w1 = 0.5 * jax.random.normal(k3, (H, 1), dtype=jnp.float32)
    b1 = 0.1 * jax.random.normal(k4, (H,), dtype=jnp.float32)
    w2 = 0.1 * jax.random.normal(k5, (1, H), dtype=jnp.float32)
    b2 = jnp.array([2.0], dtype=jnp.float32)   # keep phi > 0 so sqrt stays real
    mlp_params = (w1, b1, w2, b2)

    rpe_in = jax.random.normal(k6, (E, 2), dtype=jnp.float32)   # existing data.rpe

    new_rpe, dist_dense = learnable_spectral_distance_forward(
        complete_graph_index, batch, eigvecs, eigvals, component_index,
        mlp_params, num_graphs=B, max_nodes=N, inf_distance=512.0, rpe=rpe_in)
    new_rpe = jax.block_until_ready(new_rpe)
    dist_dense = jax.block_until_ready(dist_dense)

    ref_rpe, ref_dense = _reference(
        complete_graph_index, batch, eigvecs, eigvals, component_index,
        mlp_params, B, N, inf_distance=512.0, rpe=rpe_in)

    assert new_rpe.shape == (E, 3), new_rpe.shape
    assert dist_dense.shape == (B, N, N), dist_dense.shape
    assert jnp.allclose(dist_dense, ref_dense, atol=2e-3, rtol=2e-3), "dense mismatch"
    assert jnp.allclose(new_rpe, ref_rpe, atol=2e-3, rtol=2e-3), "rpe mismatch"

    print("KERNEL_OK")
</pallas_src>

<mosaic_0001>
module attributes {stable_mosaic.version = 11 : i64} {
  func.func @_spectral_distance_kernel(%arg0: i32, %arg1: memref<2x12x12xf32, #tpu.memory_space<vmem>>, %arg2: memref<2x1x12xf32, #tpu.memory_space<vmem>>, %arg3: memref<2x1x12xi32, #tpu.memory_space<vmem>>, %arg4: memref<2x12x1xi32, #tpu.memory_space<vmem>>, %arg5: memref<2x12x12xf32, #tpu.memory_space<vmem>>) attributes {dimension_semantics = [#tpu.dimension_semantics<parallel>], iteration_bounds = array<i64: 1>, scalar_prefetch = 0 : i64, scratch_operands = 0 : i64, tpu.core_type = #tpu.core_type<tc>, window_params = [{transform_indices = @transform_0, window_bounds = array<i64: 2, 12, 12>}, {transform_indices = @transform_1, window_bounds = array<i64: 2, 1, 12>}, {transform_indices = @transform_2, window_bounds = array<i64: 2, 1, 12>}, {transform_indices = @transform_3, window_bounds = array<i64: 2, 12, 1>}, {transform_indices = @transform_4, window_bounds = array<i64: 2, 12, 12>}]} {
    %c0 = arith.constant 0 : index
    %c0_0 = arith.constant 0 : index
    %c0_1 = arith.constant 0 : index
    %0 = vector.load %arg1[%c0, %c0_0, %c0_1] : memref<2x12x12xf32, #tpu.memory_space<vmem>>, vector<2x12x12xf32>
    %c0_2 = arith.constant 0 : index
    %c0_3 = arith.constant 0 : index
    %c0_4 = arith.constant 0 : index
    %1 = vector.load %arg2[%c0_2, %c0_3, %c0_4] : memref<2x1x12xf32, #tpu.memory_space<vmem>>, vector<2x1x12xf32>
    %2 = vector.broadcast %1 : vector<2x1x12xf32> to vector<2x12x12xf32>
    %3 = arith.mulf %0, %2 : vector<2x12x12xf32>
    %cst = arith.constant dense<0.000000e+00> : vector<2x12x12xf32>
    %4 = tpu.matmul %3, %0, %cst {dimension_numbers = #tpu.dot_dimension_numbers<[2], [2], [1], [1], [0, 0, 0, 1, 1, 1], [0], [0]>} : vector<2x12x12xf32>, vector<2x12x12xf32>, vector<2x12x12xf32> -> vector<2x12x12xf32>
    %5 = arith.mulf %3, %0 : vector<2x12x12xf32>
    %cst_5 = arith.constant dense<0.000000e+00> : vector<2x12xf32>
    %6 = vector.multi_reduction <add>, %5, %cst_5 [2] : vector<2x12x12xf32> to vector<2x12xf32>
    %7 = vector.shape_cast %6 : vector<2x12xf32> to vector<2x12x1xf32>
    %8 = arith.mulf %0, %0 : vector<2x12x12xf32>
    %cst_6 = arith.constant dense<0.000000e+00> : vector<2x1x12xf32>
    %9 = tpu.matmul %1, %8, %cst_6 {dimension_numbers = #tpu.dot_dimension_numbers<[2], [2], [1], [1], [0, 0, 0, 1, 1, 1], [0], [0]>} : vector<2x1x12xf32>, vector<2x12x12xf32>, vector<2x1x12xf32> -> vector<2x1x12xf32>
    %10 = vector.broadcast %7 : vector<2x12x1xf32> to vector<2x12x12xf32>
    %11 = vector.broadcast %9 : vector<2x1x12xf32> to vector<2x12x12xf32>
    %12 = arith.addf %10, %11 : vector<2x12x12xf32>
    %cst_7 = arith.constant 2.000000e+00 : f32
    %13 = vector.broadcast %cst_7 : f32 to vector<2x12x12xf32>
    %14 = arith.mulf %13, %4 : vector<2x12x12xf32>
    %15 = arith.subf %12, %14 : vector<2x12x12xf32>
    %cst_8 = arith.constant 0.000000e+00 : f32
    %16 = vector.broadcast %cst_8 : f32 to vector<2x12x12xf32>
    %17 = arith.maximumf %15, %16 : vector<2x12x12xf32>
    %18 = math.sqrt %17 : vector<2x12x12xf32>
    %19 = tpu.iota {dimensions = array<i32: 1>} : vector<2x12x12xi32>
    %20 = tpu.iota {dimensions = array<i32: 2>} : vector<2x12x12xi32>
    %21 = arith.cmpi eq, %19, %20 : vector<2x12x12xi32>
    %cst_9 = arith.constant 0.000000e+00 : f32
    %22 = vector.broadcast %cst_9 : f32 to vector<2x12x12xf32>
    %23 = arith.select %21, %22, %18 : vector<2x12x12xi1>, vector<2x12x12xf32>
    %c0_10 = arith.constant 0 : index
    %c0_11 = arith.constant 0 : index
    %c0_12 = arith.constant 0 : index
    %24 = vector.load %arg3[%c0_10, %c0_11, %c0_12] : memref<2x1x12xi32, #tpu.memory_space<vmem>>, vector<2x1x12xi32>
    %c0_13 = arith.constant 0 : index
    %c0_14 = arith.constant 0 : index
    %c0_15 = arith.constant 0 : index
    %25 = vector.load %arg4[%c0_13, %c0_14, %c0_15] : memref<2x12x1xi32, #tpu.memory_space<vmem>>, vector<2x12x1xi32>
    %26 = vector.broadcast %25 : vector<2x12x1xi32> to vector<2x12x12xi32>
    %27 = vector.broadcast %24 : vector<2x1x12xi32> to vector<2x12x12xi32>
    %28 = arith.cmpi eq, %26, %27 : vector<2x12x12xi32>
    %c0_i32 = arith.constant 0 : i32
    %29 = vector.broadcast %c0_i32 : i32 to vector<2x12x1xi32>
    %30 = arith.cmpi sge, %25, %29 : vector<2x12x1xi32>
    %31 = vector.broadcast %30 : vector<2x12x1xi1> to vector<2x12x12xi1>
    %32 = arith.andi %28, %31 : vector<2x12x12xi1>
    %cst_16 = arith.constant 5.120000e+02 : f32
    %33 = vector.broadcast %cst_16 : f32 to vector<2x12x12xf32>
    %34 = arith.select %32, %23, %33 : vector<2x12x12xi1>, vector<2x12x12xf32>
    %c0_17 = arith.constant 0 : index
    %c0_18 = arith.constant 0 : index
    %c0_19 = arith.constant 0 : index
    %35 = vector.load %arg5[%c0_17, %c0_18, %c0_19] : memref<2x12x12xf32, #tpu.memory_space<vmem>>, vector<2x12x12xf32>
    tpu.vector_store %arg5[%c0_17, %c0_18, %c0_19], %34 {strides = array<i32>} : memref<2x12x12xf32, #tpu.memory_space<vmem>>, vector<2x12x12xf32>,
    return
  }
  func.func @transform_0(%arg0: i32) -> (i32, i32, i32) {
    %c0_i32 = arith.constant 0 : i32
    %c0_i32_0 = arith.constant 0 : i32
    %c0_i32_1 = arith.constant 0 : i32
    return %arg0, %c0_i32, %c0_i32_0 : i32, i32, i32
  }
  func.func @transform_1(%arg0: i32) -> (i32, i32, i32) {
    %c0_i32 = arith.constant 0 : i32
    %c0_i32_0 = arith.constant 0 : i32
    %c0_i32_1 = arith.constant 0 : i32
    return %arg0, %c0_i32, %c0_i32_0 : i32, i32, i32
  }
  func.func @transform_2(%arg0: i32) -> (i32, i32, i32) {
    %c0_i32 = arith.constant 0 : i32
    %c0_i32_0 = arith.constant 0 : i32
    %c0_i32_1 = arith.constant 0 : i32
    return %arg0, %c0_i32, %c0_i32_0 : i32, i32, i32
  }
  func.func @transform_3(%arg0: i32) -> (i32, i32, i32) {
    %c0_i32 = arith.constant 0 : i32
    %c0_i32_0 = arith.constant 0 : i32
    %c0_i32_1 = arith.constant 0 : i32
    return %arg0, %c0_i32, %c0_i32_0 : i32, i32, i32
  }
  func.func @transform_4(%arg0: i32) -> (i32, i32, i32) {
    %c0_i32 = arith.constant 0 : i32
    %c0_i32_0 = arith.constant 0 : i32
    %c0_i32_1 = arith.constant 0 : i32
    return %arg0, %c0_i32, %c0_i32_0 : i32, i32, i32
  }
}

</mosaic_0001>

<llo_original>
// kernel: tpu_custom_call.1
$region0: #{tpu_custom_call.1}
  #allocation0 [shape = 'u32[]', space=smem, size = 0x4, offset = 0x4, fixed_abs, tag = 'smem constant byte address 0x4 - core index']
  #allocation1 [shape = 'u32[144,128]{1,0:T(1,128)}', space=vmem, size = 0x12000, scoped, tag = 'internal scratch']
  %s0 = inlined_call_operand.vmem [shape: f32[2,12,12], index: 0, kind: input, shape index: {}]
  %s1 = inlined_call_operand.vmem [shape: f32[2,1,12], index: 1, kind: input, shape index: {}]
  %s2 = inlined_call_operand.vmem [shape: s32[2,1,12], index: 2, kind: input, shape index: {}]
  %s3 = inlined_call_operand.vmem [shape: s32[2,12,1], index: 3, kind: input, shape index: {}]
  %s4 = inlined_call_operand.vmem [shape: f32[2,12,12], index: 4, kind: output, shape index: {}]
  %s5 = sld [smem:[#allocation0]]
  $region26: #{tpu_custom_call.1} parent=0
    _
  %s7 = ssub.s32 1, %s5
  %s8 = scalar_select 0, %s7, %s5
  // Predicated region
  $region2: #{tpu_custom_call.1} parent=0 // pred_check
    _
  $region3: #{tpu_custom_call.1} parent=0 // pred_check_branch
    %10 = sbr.rel (0) target = $region5
  $region4: #{tpu_custom_call.1} parent=0 // pred_region
    _
  $region5: #{tpu_custom_call.1} parent=0 // pred_fallthru
    _
  // Predicated region
  $region6: #{tpu_custom_call.1} parent=0 // pred_check
    _
  $region7: #{tpu_custom_call.1} parent=0 // pred_check_branch
    %12 = sbr.rel (0) target = $region9
  $region8: #{tpu_custom_call.1} parent=0 // pred_region
    _
  $region9: #{tpu_custom_call.1} parent=0 // pred_fallthru
    _
  // Predicated region
  $region10: #{tpu_custom_call.1} parent=0 // pred_check
    _
  $region11: #{tpu_custom_call.1} parent=0 // pred_check_branch
    %14 = sbr.rel (0) target = $region13
  $region12: #{tpu_custom_call.1} parent=0 // pred_region
    _
  $region13: #{tpu_custom_call.1} parent=0 // pred_fallthru
    _
  // Predicated region
  $region14: #{tpu_custom_call.1} parent=0 // pred_check
    _
  $region15: #{tpu_custom_call.1} parent=0 // pred_check_branch
    %16 = sbr.rel (0) target = $region17
  $region16: #{tpu_custom_call.1} parent=0 // pred_region
    _
  $region17: #{tpu_custom_call.1} parent=0 // pred_fallthru
    _
  %v17 = vld [vmem:[%s0] sm:$0xff]
  %v18 = vld [vmem:[%s0 + $0x8] sm:$0xf]
  %v19 = vld [vmem:[%s0 + $0x10] sm:$0xff]
  %v20 = vld [vmem:[%s0 + $0x18] sm:$0xf]
  %v21 = vld [vmem:[%s1] sm:$0x1]
  %v22 = vld [vmem:[%s1 + $0x1] sm:$0x1]
  %v25 = vlaneseq
  %v26 = vshrl.u32 %v25, 7
  %v27 = vsub.s32 0, %v26
  %v28 = vrot.slane %v21, %v27
  %v29 = vlaneseq
  %v30 = vshrl.u32 %v29, 7
  %v31 = vsub.s32 0, %v30
  %v32 = vrot.slane %v22, %v31
  %v35 = vmul.f32 %v17, %v28
  %v36 = vmul.f32 %v18, %v28
  %v37 = vmul.f32 %v19, %v32
  %v38 = vmul.f32 %v20, %v32
  %vm39 = vcmask 97280
  %v41 = vsel %vm39, %v35, 0
  %v44 = vsel %vm39, %v36, 0
  %v47 = vsel %vm39, %v17, 0
  %v50 = vsel %vm39, %v18, 0
  %52 = vmatprep.subr.mxu0 0.0
  %53 = vmatpush1.xpose.msra.mxu0 0.0
  %54 = vmatprep.subr.mxu0 0.0
  %55 = vmatpush1.xpose.msra.mxu0 0.0
  %56 = vmatprep.subr.mxu0 0.0
  %57 = vmatpush1.xpose.msra.mxu0 0.0
  %58 = vmatprep.subr.mxu0 0.0
  %59 = vmatpush1.xpose.msra.mxu0 0.0
  %60 = vmatprep.subr.mxu0 0.0
  %61 = vmatpush1.xpose.msra.mxu0 0.0
  %62 = vmatprep.subr.mxu0 0.0
  %63 = vmatpush1.xpose.msra.mxu0 0.0
  %64 = vmatprep.subr.mxu0 0.0
  %65 = vmatpush1.xpose.msra.mxu0 0.0
  %66 = vmatprep.subr.mxu0 0.0
  %67 = vmatpush1.xpose.msra.mxu0 0.0
  %68 = vmatprep.subr.mxu0 0.0
  %69 = vmatpush1.xpose.msra.mxu0 0.0
  %70 = vmatprep.subr.mxu0 0.0
  %71 = vmatpush1.xpose.msra.mxu0 0.0
  %72 = vmatprep.subr.mxu0 0.0
  %73 = vmatpush1.xpose.msra.mxu0 0.0
  %74 = vmatprep.subr.mxu0 0.0
  %75 = vmatpush1.xpose.msra.mxu0 0.0
  %76 = vmatprep.subr.mxu0 0.0
  %77 = vmatpush1.xpose.msra.mxu0 0.0
  %78 = vmatprep.subr.mxu0 0.0
  %79 = vmatpush1.xpose.msra.mxu0 0.0
  %80 = vmatprep.subr.mxu0 0.0
  %81 = vmatpush1.xpose.msra.mxu0 %v50
  %82 = vmatprep.subr.mxu0 0.0
  %83 = vmatpush1.xpose.msra.mxu0 %v47
  %84 = vmatprep.subr.mxu0 0.0
  %85 = vmatpush2.xpose.msra.mxu0 0.0
  %86 = vmatprep.subr.mxu0 0.0
  %87 = vmatpush2.xpose.msra.mxu0 0.0
  %88 = vmatprep.subr.mxu0 0.0
  %89 = vmatpush2.xpose.msra.mxu0 0.0
  %90 = vmatprep.subr.mxu0 0.0
  %91 = vmatpush2.xpose.msra.mxu0 0.0
  %92 = vmatprep.subr.mxu0 0.0
  %93 = vmatpush2.xpose.msra.mxu0 0.0
  %94 = vmatprep.subr.mxu0 0.0
  %95 = vmatpush2.xpose.msra.mxu0 0.0
  %96 = vmatprep.subr.mxu0 0.0
  %97 = vmatpush2.xpose.msra.mxu0 0.0
  %98 = vmatprep.subr.mxu0 0.0
  %99 = vmatpush2.xpose.msra.mxu0 0.0
  %100 = vmatprep.subr.mxu0 0.0
  %101 = vmatpush2.xpose.msra.mxu0 0.0
  %102 = vmatprep.subr.mxu0 0.0
  %103 = vmatpush2.xpose.msra.mxu0 0.0
  %104 = vmatprep.subr.mxu0 0.0
  %105 = vmatpush2.xpose.msra.mxu0 0.0
  %106 = vmatprep.subr.mxu0 0.0
  %107 = vmatpush2.xpose.msra.mxu0 0.0
  %108 = vmatprep.subr.mxu0 0.0
  %109 = vmatpush2.xpose.msra.mxu0 0.0
  %110 = vmatprep.subr.mxu0 0.0
  %111 = vmatpush2.xpose.msra.mxu0 0.0
  %112 = vmatprep.subr.mxu0 0.0
  %113 = vmatpush2.xpose.msra.mxu0 0.0
  %114 = vmatprep.subr.mxu0 0.0
  %115 = vmatpush2.xpose.msra.mxu0 0.0
  %116 = vmatprep.mubr.f32.mxu0 0.0
  %117 = vmatmul.mubr.f32.gmra.mxu0 %v41
  %v118 = vpop.f32.mrf.mxu0
  %v119 = vadd.f32 0.0, %v118
  %v120 = vpop.f32.mrf.mxu0
  %121 = vmatprep.mubr.f32.mxu0 0.0
  %122 = vmatmul.mubr.f32.gmra.mxu0 %v44
  %v123 = vpop.f32.mrf.mxu0
  %v124 = vadd.f32 0.0, %v123
  %v125 = vpop.f32.mrf.mxu0
  %126 = vdwg.mxu0
  %v128 = vsel %vm39, %v37, 0
  %v131 = vsel %vm39, %v38, 0
  %v134 = vsel %vm39, %v19, 0
  %v137 = vsel %vm39, %v20, 0
  %139 = vmatprep.subr.mxu0 0.0
  %140 = vmatpush1.xpose.msra.mxu0 0.0
  %141 = vmatprep.subr.mxu0 0.0
  %142 = vmatpush1.xpose.msra.mxu0 0.0
  %143 = vmatprep.subr.mxu0 0.0
  %144 = vmatpush1.xpose.msra.mxu0 0.0
  %145 = vmatprep.subr.mxu0 0.0
  %146 = vmatpush1.xpose.msra.mxu0 0.0
  %147 = vmatprep.subr.mxu0 0.0
  %148 = vmatpush1.xpose.msra.mxu0 0.0
  %149 = vmatprep.subr.mxu0 0.0
  %150 = vmatpush1.xpose.msra.mxu0 0.0
  %151 = vmatprep.subr.mxu0 0.0
  %152 = vmatpush1.xpose.msra.mxu0 0.0
  %153 = vmatprep.subr.mxu0 0.0
  %154 = vmatpush1.xpose.msra.mxu0 0.0
  %155 = vmatprep.subr.mxu0 0.0
  %156 = vmatpush1.xpose.msra.mxu0 0.0
  %157 = vmatprep.subr.mxu0 0.0
  %158 = vmatpush1.xpose.msra.mxu0 0.0
  %159 = vmatprep.subr.mxu0 0.0
  %160 = vmatpush1.xpose.msra.mxu0 0.0
  %161 = vmatprep.subr.mxu0 0.0
  %162 = vmatpush1.xpose.msra.mxu0 0.0
  %163 = vmatprep.subr.mxu0 0.0
  %164 = vmatpush1.xpose.msra.mxu0 0.0
  %165 = vmatprep.subr.mxu0 0.0
  %166 = vmatpush1.xpose.msra.mxu0 0.0
  %167 = vmatprep.subr.mxu0 0.0
  %168 = vmatpush1.xpose.msra.mxu0 %v137
  %169 = vmatprep.subr.mxu0 0.0
  %170 = vmatpush1.xpose.msra.mxu0 %v134
  %171 = vmatprep.subr.mxu0 0.0
  %172 = vmatpush2.xpose.msra.mxu0 0.0
  %173 = vmatprep.subr.mxu0 0.0
  %174 = vmatpush2.xpose.msra.mxu0 0.0
  %175 = vmatprep.subr.mxu0 0.0
  %176 = vmatpush2.xpose.msra.mxu0 0.0
  %177 = vmatprep.subr.mxu0 0.0
  %178 = vmatpush2.xpose.msra.mxu0 0.0
  %179 = vmatprep.subr.mxu0 0.0
  %180 = vmatpush2.xpose.msra.mxu0 0.0
  %181 = vmatprep.subr.mxu0 0.0
  %182 = vmatpush2.xpose.msra.mxu0 0.0
  %183 = vmatprep.subr.mxu0 0.0
  %184 = vmatpush2.xpose.msra.mxu0 0.0
  %185 = vmatprep.subr.mxu0 0.0
  %186 = vmatpush2.xpose.msra.mxu0 0.0
  %187 = vmatprep.subr.mxu0 0.0
  %188 = vmatpush2.xpose.msra.mxu0 0.0
  %189 = vmatprep.subr.mxu0 0.0
  %190 = vmatpush2.xpose.msra.mxu0 0.0
  %191 = vmatprep.subr.mxu0 0.0
  %192 = vmatpush2.xpose.msra.mxu0 0.0
  %193 = vmatprep.subr.mxu0 0.0
  %194 = vmatpush2.xpose.msra.mxu0 0.0
  %195 = vmatprep.subr.mxu0 0.0
  %196 = vmatpush2.xpose.msra.mxu0 0.0
  %197 = vmatprep.subr.mxu0 0.0
  %198 = vmatpush2.xpose.msra.mxu0 0.0
  %199 = vmatprep.subr.mxu0 0.0
  %200 = vmatpush2.xpose.msra.mxu0 0.0
  %201 = vmatprep.subr.mxu0 0.0
  %202 = vmatpush2.xpose.msra.mxu0 0.0
  %203 = vmatprep.mubr.f32.mxu0 0.0
  %204 = vmatmul.mubr.f32.gmra.mxu0 %v128
  %v205 = vpop.f32.mrf.mxu0
  %v206 = vadd.f32 0.0, %v205
  %v207 = vpop.f32.mrf.mxu0
  %208 = vmatprep.mubr.f32.mxu0 0.0
  %209 = vmatmul.mubr.f32.gmra.mxu0 %v131
  %v210 = vpop.f32.mrf.mxu0
  %v211 = vadd.f32 0.0, %v210
  %v212 = vpop.f32.mrf.mxu0
  %213 = vdwg.mxu0
  %v214 = vmul.f32 %v35, %v17
  %v215 = vmul.f32 %v36, %v18
  %v216 = vmul.f32 %v37, %v19
  %v217 = vmul.f32 %v38, %v20
  %v218 = vsel %vm39, %v214, 0.0
  %219 = vadd.xlane.f32.xlu0 %v218
  %v220 = vpop.xlane.xlu0 %219
  %vm221 = vcmask 93184
  %v222 = vsel %vm221, %v215, 0.0
  %223 = vadd.xlane.f32.xlu0 %v222
  %v224 = vpop.xlane.xlu0 %223
  %v225 = vsel %vm39, %v216, 0.0
  %226 = vadd.xlane.f32.xlu0 %v225
  %v227 = vpop.xlane.xlu0 %226
  %v228 = vsel %vm221, %v217, 0.0
  %229 = vadd.xlane.f32.xlu0 %v228
  %v230 = vpop.xlane.xlu0 %229
  %v231 = vmul.f32 %v17, %v17
  %v232 = vmul.f32 %v18, %v18
  %v233 = vmul.f32 %v19, %v19
  %v234 = vmul.f32 %v20, %v20
  %v235 = vsel %vm39, %v21, 0
  %v238 = vsel %vm39, %v231, 0
  %v241 = vsel %vm39, %v232, 0
  %243 = vmatprep.subr.mxu0 0.0
  %244 = vmatpush1.xpose.msra.mxu0 0.0
  %245 = vmatprep.subr.mxu0 0.0
  %246 = vmatpush1.xpose.msra.mxu0 0.0
  %247 = vmatprep.subr.mxu0 0.0
  %248 = vmatpush1.xpose.msra.mxu0 0.0
  %249 = vmatprep.subr.mxu0 0.0
  %250 = vmatpush1.xpose.msra.mxu0 0.0
  %251 = vmatprep.subr.mxu0 0.0
  %252 = vmatpush1.xpose.msra.mxu0 0.0
  %253 = vmatprep.subr.mxu0 0.0
  %254 = vmatpush1.xpose.msra.mxu0 0.0
  %255 = vmatprep.subr.mxu0 0.0
  %256 = vmatpush1.xpose.msra.mxu0 0.0
  %257 = vmatprep.subr.mxu0 0.0
  %258 = vmatpush1.xpose.msra.mxu0 0.0
  %259 = vmatprep.subr.mxu0 0.0
  %260 = vmatpush1.xpose.msra.mxu0 0.0
  %261 = vmatprep.subr.mxu0 0.0
  %262 = vmatpush1.xpose.msra.mxu0 0.0
  %263 = vmatprep.subr.mxu0 0.0
  %264 = vmatpush1.xpose.msra.mxu0 0.0
  %265 = vmatprep.subr.mxu0 0.0
  %266 = vmatpush1.xpose.msra.mxu0 0.0
  %267 = vmatprep.subr.mxu0 0.0
  %268 = vmatpush1.xpose.msra.mxu0 0.0
  %269 = vmatprep.subr.mxu0 0.0
  %270 = vmatpush1.xpose.msra.mxu0 0.0
  %271 = vmatprep.subr.mxu0 0.0
  %272 = vmatpush1.xpose.msra.mxu0 %v241
  %273 = vmatprep.subr.mxu0 0.0
  %274 = vmatpush1.xpose.msra.mxu0 %v238
  %275 = vmatprep.subr.mxu0 0.0
  %276 = vmatpush2.xpose.msra.mxu0 0.0
  %277 = vmatprep.subr.mxu0 0.0
  %278 = vmatpush2.xpose.msra.mxu0 0.0
  %279 = vmatprep.subr.mxu0 0.0
  %280 = vmatpush2.xpose.msra.mxu0 0.0
  %281 = vmatprep.subr.mxu0 0.0
  %282 = vmatpush2.xpose.msra.mxu0 0.0
  %283 = vmatprep.subr.mxu0 0.0
  %284 = vmatpush2.xpose.msra.mxu0 0.0
  %285 = vmatprep.subr.mxu0 0.0
  %286 = vmatpush2.xpose.msra.mxu0 0.0
  %287 = vmatprep.subr.mxu0 0.0
  %288 = vmatpush2.xpose.msra.mxu0 0.0
  %289 = vmatprep.subr.mxu0 0.0
  %290 = vmatpush2.xpose.msra.mxu0 0.0
  %291 = vmatprep.subr.mxu0 0.0
  %292 = vmatpush2.xpose.msra.mxu0 0.0
  %293 = vmatprep.subr.mxu0 0.0
  %294 = vmatpush2.xpose.msra.mxu0 0.0
  %295 = vmatprep.subr.mxu0 0.0
  %296 = vmatpush2.xpose.msra.mxu0 0.0
  %297 = vmatprep.subr.mxu0 0.0
  %298 = vmatpush2.xpose.msra.mxu0 0.0
  %299 = vmatprep.subr.mxu0 0.0
  %300 = vmatpush2.xpose.msra.mxu0 0.0
  %301 = vmatprep.subr.mxu0 0.0
  %302 = vmatpush2.xpose.msra.mxu0 0.0
  %303 = vmatprep.subr.mxu0 0.0
  %304 = vmatpush2.xpose.msra.mxu0 0.0
  %305 = vmatprep.subr.mxu0 0.0
  %306 = vmatpush2.xpose.msra.mxu0 0.0
  %307 = vmatprep.mubr.f32.mxu0 0.0
  %308 = vmatmul.mubr.f32.gmra.mxu0 %v235
  %v309 = vpop.f32.mrf.mxu0
  %v310 = vadd.f32 0.0, %v309
  %v311 = vpop.f32.mrf.mxu0
  %312 = vdwg.mxu0
  %v313 = vsel %vm39, %v22, 0
  %v316 = vsel %vm39, %v233, 0
  %v319 = vsel %vm39, %v234, 0
  %321 = vmatprep.subr.mxu0 0.0
  %322 = vmatpush1.xpose.msra.mxu0 0.0
  %323 = vmatprep.subr.mxu0 0.0
  %324 = vmatpush1.xpose.msra.mxu0 0.0
  %325 = vmatprep.subr.mxu0 0.0
  %326 = vmatpush1.xpose.msra.mxu0 0.0
  %327 = vmatprep.subr.mxu0 0.0
  %328 = vmatpush1.xpose.msra.mxu0 0.0
  %329 = vmatprep.subr.mxu0 0.0
  %330 = vmatpush1.xpose.msra.mxu0 0.0
  %331 = vmatprep.subr.mxu0 0.0
  %332 = vmatpush1.xpose.msra.mxu0 0.0
  %333 = vmatprep.subr.mxu0 0.0
  %334 = vmatpush1.xpose.msra.mxu0 0.0
  %335 = vmatprep.subr.mxu0 0.0
  %336 = vmatpush1.xpose.msra.mxu0 0.0
  %337 = vmatprep.subr.mxu0 0.0
  %338 = vmatpush1.xpose.msra.mxu0 0.0
  %339 = vmatprep.subr.mxu0 0.0
  %340 = vmatpush1.xpose.msra.mxu0 0.0
  %341 = vmatprep.subr.mxu0 0.0
  %342 = vmatpush1.xpose.msra.mxu0 0.0
  %343 = vmatprep.subr.mxu0 0.0
  %344 = vmatpush1.xpose.msra.mxu0 0.0
  %345 = vmatprep.subr.mxu0 0.0
  %346 = vmatpush1.xpose.msra.mxu0 0.0
  %347 = vmatprep.subr.mxu0 0.0
  %348 = vmatpush1.xpose.msra.mxu0 0.0
  %349 = vmatprep.subr.mxu0 0.0
  %350 = vmatpush1.xpose.msra.mxu0 %v319
  %351 = vmatprep.subr.mxu0 0.0
  %352 = vmatpush1.xpose.msra.mxu0 %v316
  %353 = vmatprep.subr.mxu0 0.0
  %354 = vmatpush2.xpose.msra.mxu0 0.0
  %355 = vmatprep.subr.mxu0 0.0
  %356 = vmatpush2.xpose.msra.mxu0 0.0
  %357 = vmatprep.subr.mxu0 0.0
  %358 = vmatpush2.xpose.msra.mxu0 0.0
  %359 = vmatprep.subr.mxu0 0.0
  %360 = vmatpush2.xpose.msra.mxu0 0.0
  %361 = vmatprep.subr.mxu0 0.0
  %362 = vmatpush2.xpose.msra.mxu0 0.0
  %363 = vmatprep.subr.mxu0 0.0
  %364 = vmatpush2.xpose.msra.mxu0 0.0
  %365 = vmatprep.subr.mxu0 0.0
  %366 = vmatpush2.xpose.msra.mxu0 0.0
  %367 = vmatprep.subr.mxu0 0.0
  %368 = vmatpush2.xpose.msra.mxu0 0.0
  %369 = vmatprep.subr.mxu0 0.0
  %370 = vmatpush2.xpose.msra.mxu0 0.0
  %371 = vmatprep.subr.mxu0 0.0
  %372 = vmatpush2.xpose.msra.mxu0 0.0
  %373 = vmatprep.subr.mxu0 0.0
  %374 = vmatpush2.xpose.msra.mxu0 0.0
  %375 = vmatprep.subr.mxu0 0.0
  %376 = vmatpush2.xpose.msra.mxu0 0.0
  %377 = vmatprep.subr.mxu0 0.0
  %378 = vmatpush2.xpose.msra.mxu0 0.0
  %379 = vmatprep.subr.mxu0 0.0
  %380 = vmatpush2.xpose.msra.mxu0 0.0
  %381 = vmatprep.subr.mxu0 0.0
  %382 = vmatpush2.xpose.msra.mxu0 0.0
  %383 = vmatprep.subr.mxu0 0.0
  %384 = vmatpush2.xpose.msra.mxu0 0.0
  %385 = vmatprep.mubr.f32.mxu0 0.0
  %386 = vmatmul.mubr.f32.gmra.mxu0 %v313
  %v387 = vpop.f32.mrf.mxu0
  %v388 = vadd.f32 0.0, %v387
  %v389 = vpop.f32.mrf.mxu0
  %390 = vdwg.mxu0
  %v391 = vlaneseq
  %v392 = vshrl.u32 %v391, 7
  %v393 = vsub.s32 0, %v392
  %v394 = vrot.slane %v310, %v393
  %v395 = vlaneseq
  %v396 = vshrl.u32 %v395, 7
  %v397 = vsub.s32 0, %v396
  %v398 = vrot.slane %v388, %v397
  %v399 = vadd.f32 %v220, %v394
  %v400 = vadd.f32 %v224, %v394
  %v401 = vadd.f32 %v227, %v398
  %v402 = vadd.f32 %v230, %v398
  %v403 = vmul.f32 %v119, 2.0
  %v404 = vmul.f32 %v124, 2.0
  %v405 = vmul.f32 %v206, 2.0
  %v406 = vmul.f32 %v211, 2.0
  %v407 = vsub.f32 %v399, %v403
  %v408 = vsub.f32 %v400, %v404
  %v409 = vsub.f32 %v401, %v405
  %v410 = vsub.f32 %v402, %v406
  %v411 = vmax.f32 %v407, 0.0
  %v412 = vmax.f32 %v408, 0.0
  %v413 = vmax.f32 %v409, 0.0
  %v414 = vmax.f32 %v410, 0.0
  %v415 = vrsqrt.pop %v411
  %v416 = vmul.f32 %v411, %v415
  %vm417 = vcmp.eq.f32.partialorder %v411, inf
  %v418 = vsel %vm417, %v411, %v416
  %vm419 = vcmp.eq.f32.partialorder %v411, 0.0
  %v420 = vand.u32 %v411, 2147483648
  %v421 = vsel %vm419, %v420, %v418
  %v422 = vrsqrt.pop %v412
  %v423 = vmul.f32 %v412, %v422
  %vm424 = vcmp.eq.f32.partialorder %v412, inf
  %v425 = vsel %vm424, %v412, %v423
  %vm426 = vcmp.eq.f32.partialorder %v412, 0.0
  %v427 = vand.u32 %v412, 2147483648
  %v428 = vsel %vm426, %v427, %v425
  %v429 = vrsqrt.pop %v413
  %v430 = vmul.f32 %v413, %v429
  %vm431 = vcmp.eq.f32.partialorder %v413, inf
  %v432 = vsel %vm431, %v413, %v430
  %vm433 = vcmp.eq.f32.partialorder %v413, 0.0
  %v434 = vand.u32 %v413, 2147483648
  %v435 = vsel %vm433, %v434, %v432
  %v436 = vrsqrt.pop %v414
  %v437 = vmul.f32 %v414, %v436
  %vm438 = vcmp.eq.f32.partialorder %v414, inf
  %v439 = vsel %vm438, %v414, %v437
  %vm440 = vcmp.eq.f32.partialorder %v414, 0.0
  %v441 = vand.u32 %v414, 2147483648
  %v442 = vsel %vm440, %v441, %v439
  %v443 = vlaneseq
  %v444 = vshrl.u32 %v443, 7
  %v445 = vadd.s32 %v444, 8
  %v446 = vlaneseq
  %v447 = vand.u32 %v446, 127
  %vm448 = vcmp.eq.s32.totalorder %v444, %v447
  %vm449 = vcmp.eq.s32.totalorder %v445, %v447
  %v450 = vsel %vm448, 0.0, %v421
  %v451 = vsel %vm449, 0.0, %v428
  %v452 = vsel %vm448, 0.0, %v435
  %v453 = vsel %vm449, 0.0, %v442
  %v454 = vld [vmem:[%s2] sm:$0x1]
  %v455 = vld [vmem:[%s2 + $0x1] sm:$0x1]
  %v456 = vld [vmem:[%s3] sm:$0xff]
  %v457 = vld [vmem:[%s3 + $0x8] sm:$0xf]
  %v458 = vld [vmem:[%s3 + $0x10] sm:$0xff]
  %v459 = vld [vmem:[%s3 + $0x18] sm:$0xf]
  %460 = vset.pattern.permute.xlu0 0
  %461 = vperm.xlu0 %460, %v456
  %v462 = vpop.permute.xlu0 %461
  %463 = vset.pattern.permute.xlu0 0
  %464 = vperm.xlu0 %463, %v457
  %v465 = vpop.permute.xlu0 %464
  %466 = vset.pattern.permute.xlu0 0
  %467 = vperm.xlu0 %466, %v458
  %v468 = vpop.permute.xlu0 %467
  %469 = vset.pattern.permute.xlu0 0
  %470 = vperm.xlu0 %469, %v459
  %v471 = vpop.permute.xlu0 %470
  %v472 = vlaneseq
  %v473 = vshrl.u32 %v472, 7
  %v474 = vsub.s32 0, %v473
  %v475 = vrot.slane %v454, %v474
  %v476 = vlaneseq
  %v477 = vshrl.u32 %v476, 7
  %v478 = vsub.s32 0, %v477
  %v479 = vrot.slane %v455, %v478
  %vm480 = vcmp.eq.s32.totalorder %v462, %v475
  %vm481 = vcmp.eq.s32.totalorder %v465, %v475
  %vm482 = vcmp.eq.s32.totalorder %v468, %v479
  %vm483 = vcmp.eq.s32.totalorder %v471, %v479
  %vm484 = vcmp.ge.s32.totalorder %v456, 0
  %vm485 = vcmp.ge.s32.totalorder %v457, 0
  %vm486 = vcmp.ge.s32.totalorder %v458, 0
  %vm487 = vcmp.ge.s32.totalorder %v459, 0
  %v488 = vsel %vm484, 1, 0
  %v489 = vsel %vm485, 1, 0
  %v490 = vsel %vm486, 1, 0
  %v491 = vsel %vm487, 1, 0
  %492 = vset.pattern.permute.xlu0 0
  %493 = vperm.xlu0 %492, %v488
  %v494 = vpop.permute.xlu0 %493
  %495 = vset.pattern.permute.xlu0 0
  %496 = vperm.xlu0 %495, %v489
  %v497 = vpop.permute.xlu0 %496
  %498 = vset.pattern.permute.xlu0 0
  %499 = vperm.xlu0 %498, %v490
  %v500 = vpop.permute.xlu0 %499
  %501 = vset.pattern.permute.xlu0 0
  %502 = vperm.xlu0 %501, %v491
  %v503 = vpop.permute.xlu0 %502
  %vm504 = vcmp.eq.s32.totalorder %v494, 1
  %vm505 = vcmp.eq.s32.totalorder %v497, 1
  %vm506 = vcmp.eq.s32.totalorder %v500, 1
  %vm507 = vcmp.eq.s32.totalorder %v503, 1
  %vm508 = vmand %vm480, %vm504
  %vm509 = vmand %vm481, %vm505
  %vm510 = vmand %vm482, %vm506
  %vm511 = vmand %vm483, %vm507
  %v512 = vsel %vm508, %v450, 512.0
  %v513 = vsel %vm509, %v451, 512.0
  %v514 = vsel %vm510, %v452, 512.0
  %v515 = vsel %vm511, %v453, 512.0
  %516 = vst.msk [vmem:[%s4] sm:$0xff] %vm39, %v512
  %517 = vst.msk [vmem:[%s4 + $0x8] sm:$0xf] %vm221, %v513
  %518 = vst.msk [vmem:[%s4 + $0x10] sm:$0xff] %vm39, %v514
  %519 = vst.msk [vmem:[%s4 + $0x18] sm:$0xf] %vm221, %v515
  // Predicated region
  $region18: #{tpu_custom_call.1} parent=0 // pred_check
    _
  $region19: #{tpu_custom_call.1} parent=0 // pred_check_branch
    %521 = sbr.rel (0) target = $region21
  $region20: #{tpu_custom_call.1} parent=0 // pred_region
    _
  $region21: #{tpu_custom_call.1} parent=0 // pred_fallthru
    _
  // Predicated region
  $region22: #{tpu_custom_call.1} parent=0 // pred_check
    _
  $region23: #{tpu_custom_call.1} parent=0 // pred_check_branch
    %523 = sbr.rel (0) target = $region25
  $region24: #{tpu_custom_call.1} parent=0 // pred_region
    _
  $region25: #{tpu_custom_call.1} parent=0 // pred_fallthru
    _

</llo_original>
